<compile_context>
chip_gen: v7x
topology: tpu7x:2x2x1
jax: 0.10.0
libtpu: 0.0.40
codegen_flags: <defaults>
</compile_context>

<pallas_src>
import jax
import jax.numpy as jnp
from jax.experimental import pallas as pl
from jax.experimental.pallas import tpu as pltpu


def _round_up(x, m):
    return ((x + m - 1) // m) * m


def _vision_kernel(x_ref, w_ref, b_ref, o_ref):
    # x_ref : (TB, 27)  f32   batch tile of flattened patches (cast to bf16 here)
    # w_ref : (27, N)   bf16  fused conv+fc weight (VMEM-resident across steps)
    # b_ref : (1,  N)   f32   fused bias           (VMEM-resident across steps)
    # o_ref : (TB, N)   bf16  f32 accumulate + bias inside, cast on final store
    x = x_ref[...].astype(w_ref.dtype)
    acc = jnp.dot(x, w_ref[...], preferred_element_type=jnp.float32)
    o_ref[...] = (acc + b_ref[...]).astype(o_ref.dtype)


def prepare_params(conv_w, conv_b, fc_w, fc_b, compute_dtype=jnp.bfloat16):
    """One-time weight prep (hoisted out of the call path).

    Returns:
      w_fused: (27, 512) compute_dtype
      b_fused: (1, 512)  float32
    """
    wc = conv_w.reshape(conv_w.shape[0], -1).T                     # (27, 64)
    wf = fc_w.T                                                    # (64, 512)
    w_fused = (wc.astype(jnp.float32) @ wf.astype(jnp.float32))    # (27, 512) f32
    b_fused = conv_b.astype(jnp.float32) @ wf.astype(jnp.float32) + fc_b  # (512,)
    return w_fused.astype(compute_dtype), b_fused.reshape(1, -1).astype(jnp.float32)


def vision_model_forward(x, w_fused, b_fused, *, block_b=4096, out_dtype=jnp.bfloat16):
    """x: (B, 3, 3, 3) NCHW float32.  Returns (B, 512) out_dtype, same math as
    fc(conv(x).flatten(1)) of the PyTorch module (up to bf16 MXU/store rounding)."""
    B, C, H, W = x.shape
    assert (C, H, W) == (3, 3, 3), "Linear(64,...) requires conv output 1x1"
    K = C * H * W                        # 27
    Kw, N = w_fused.shape                # (27, 512)
    assert Kw == K

    # im2col: single output position -> patch == whole input, order (c, kh, kw).
    # Pure reshape (no cast, no pad) -> no extra HBM pass in the wrapper.
    x_flat = x.reshape(B, K)

    # Batch tile: large tiles for big batches; small batches round up to 8
    # sublanes.  Non-divisible batches are handled by the partial last block
    # (out-of-range output rows are discarded by Pallas) -> no pad / no out[:B].
    TB = block_b if B >= block_b else _round_up(B, 8)
    grid = (pl.cdiv(B, TB),)

    out = pl.pallas_call(
        _vision_kernel,
        out_shape=jax.ShapeDtypeStruct((B, N), out_dtype),
        grid_spec=pltpu.PrefetchScalarGridSpec(
            num_scalar_prefetch=0,
            grid=grid,
            in_specs=[
                pl.BlockSpec((TB, K), lambda i: (i, 0)),   # batch tile, pipelined
                pl.BlockSpec((K, N), lambda i: (0, 0)),    # weight: VMEM-resident
                pl.BlockSpec((1, N), lambda i: (0, 0)),    # bias:   VMEM-resident
            ],
            out_specs=pl.BlockSpec((TB, N), lambda i: (i, 0)),
        ),
        compiler_params=pltpu.CompilerParams(
            dimension_semantics=("parallel",),             # megacore split over batch
            vmem_limit_bytes=32 * 1024 * 1024,             # headroom; safe on v5e/v6e/v7x
        ),
    )(x_flat, w_fused, b_fused)
    return out


def init_params(key):
    """Deterministic PyTorch-style (uniform fan-in) init for conv + fc."""
    k1, k2, k3, k4 = jax.random.split(key, 4)
    # Conv2d(3, 64, kernel_size=3): weight (64, 3, 3, 3), bias (64,)
    fan_in_conv = 3 * 3 * 3
    bound_c = 1.0 / (fan_in_conv ** 0.5)
    conv_w = jax.random.uniform(k1, (64, 3, 3, 3), jnp.float32, -bound_c, bound_c)
    conv_b = jax.random.uniform(k2, (64,), jnp.float32, -bound_c, bound_c)
    # Linear(64, 512): weight (512, 64), bias (512,)
    fan_in_fc = 64
    bound_f = 1.0 / (fan_in_fc ** 0.5)
    fc_w = jax.random.uniform(k3, (512, 64), jnp.float32, -bound_f, bound_f)
    fc_b = jax.random.uniform(k4, (512,), jnp.float32, -bound_f, bound_f)
    return conv_w, conv_b, fc_w, fc_b


if __name__ == "__main__":
    key = jax.random.PRNGKey(0)
    pkey, xkey = jax.random.split(key)
    conv_w, conv_b, fc_w, fc_b = init_params(pkey)

    # One-time parameter preparation (fused conv+fc weight, bf16 for the MXU).
    w_fused, b_fused = prepare_params(conv_w, conv_b, fc_w, fc_b)

    B = 2
    x = jax.random.normal(xkey, (B, 3, 3, 3), jnp.float32)   # NCHW

    out = vision_model_forward(x, w_fused, b_fused)
    out = jax.block_until_ready(out)

    # Pure-JAX f32 reference with the original (unfused) math path.
    ref = (x.reshape(B, -1) @ conv_w.reshape(64, -1).T + conv_b) @ fc_w.T + fc_b
    assert out.shape == (B, 512)
    assert out.dtype == jnp.bfloat16
    # bf16 MXU operands + bf16 output store + fused rounding order -> loosened tol.
    assert jnp.allclose(out.astype(jnp.float32), ref, atol=6e-2, rtol=3e-2)

    print("KERNEL_OK")
</pallas_src>

<mosaic_0001>
module attributes {stable_mosaic.version = 11 : i64} {
  func.func @_vision_kernel(%arg0: i32, %arg1: memref<8x27xf32, #tpu.memory_space<vmem>>, %arg2: memref<27x512xbf16, #tpu.memory_space<vmem>>, %arg3: memref<1x512xf32, #tpu.memory_space<vmem>>, %arg4: memref<8x512xbf16, #tpu.memory_space<vmem>>) attributes {dimension_semantics = [#tpu.dimension_semantics<parallel>], iteration_bounds = array<i64: 1>, scalar_prefetch = 0 : i64, scratch_operands = 0 : i64, tpu.core_type = #tpu.core_type<tc>, window_params = [{transform_indices = @transform_0, window_bounds = array<i64: 8, 27>}, {pipeline_mode = #tpu.pipeline_mode<synchronous>, transform_indices = @transform_1, window_bounds = array<i64: 27, 512>}, {pipeline_mode = #tpu.pipeline_mode<synchronous>, transform_indices = @transform_2, window_bounds = array<i64: 1, 512>}, {transform_indices = @transform_3, window_bounds = array<i64: 8, 512>}]} {
    %c0 = arith.constant 0 : index
    %c0_0 = arith.constant 0 : index
    %0 = vector.load %arg1[%c0, %c0_0] : memref<8x27xf32, #tpu.memory_space<vmem>>, vector<8x27xf32>
    %1 = arith.truncf %0 : vector<8x27xf32> to vector<8x27xbf16>
    %c0_1 = arith.constant 0 : index
    %c0_2 = arith.constant 0 : index
    %2 = vector.load %arg2[%c0_1, %c0_2] : memref<27x512xbf16, #tpu.memory_space<vmem>>, vector<27x512xbf16>
    %cst = arith.constant dense<0.000000e+00> : vector<8x512xf32>
    %3 = tpu.matmul %1, %2, %cst {dimension_numbers = #tpu.dot_dimension_numbers<[1], [0], [0], [1], [0, 0, 1, 1], [], []>} : vector<8x27xbf16>, vector<27x512xbf16>, vector<8x512xf32> -> vector<8x512xf32>
    %c0_3 = arith.constant 0 : index
    %c0_4 = arith.constant 0 : index
    %4 = vector.load %arg3[%c0_3, %c0_4] : memref<1x512xf32, #tpu.memory_space<vmem>>, vector<1x512xf32>
    %5 = vector.broadcast %4 : vector<1x512xf32> to vector<8x512xf32>
    %6 = arith.addf %3, %5 : vector<8x512xf32>
    %7 = arith.truncf %6 : vector<8x512xf32> to vector<8x512xbf16>
    %c0_5 = arith.constant 0 : index
    %c0_6 = arith.constant 0 : index
    %8 = vector.load %arg4[%c0_5, %c0_6] : memref<8x512xbf16, #tpu.memory_space<vmem>>, vector<8x512xbf16>
    tpu.vector_store %arg4[%c0_5, %c0_6], %7 {strides = array<i32>} : memref<8x512xbf16, #tpu.memory_space<vmem>>, vector<8x512xbf16>,
    return
  }
  func.func @transform_0(%arg0: i32) -> (i32, i32) {
    %c0_i32 = arith.constant 0 : i32
    %c0_i32_0 = arith.constant 0 : i32
    return %arg0, %c0_i32 : i32, i32
  }
  func.func @transform_1(%arg0: i32) -> (i32, i32) {
    %c0_i32 = arith.constant 0 : i32
    %c0_i32_0 = arith.constant 0 : i32
    %c0_i32_1 = arith.constant 0 : i32
    return %c0_i32, %c0_i32_0 : i32, i32
  }
  func.func @transform_2(%arg0: i32) -> (i32, i32) {
    %c0_i32 = arith.constant 0 : i32
    %c0_i32_0 = arith.constant 0 : i32
    %c0_i32_1 = arith.constant 0 : i32
    return %c0_i32, %c0_i32_0 : i32, i32
  }
  func.func @transform_3(%arg0: i32) -> (i32, i32) {
    %c0_i32 = arith.constant 0 : i32
    %c0_i32_0 = arith.constant 0 : i32
    return %arg0, %c0_i32 : i32, i32
  }
}

</mosaic_0001>

<llo_original>
// kernel: tpu_custom_call.1
$region0: #{tpu_custom_call.1}
  #allocation0 [shape = 'u32[]', space=smem, size = 0x4, offset = 0x4, fixed_abs, tag = 'smem constant byte address 0x4 - core index']
  #allocation1 [shape = 'u32[144,128]{1,0:T(1,128)}', space=vmem, size = 0x12000, scoped, tag = 'internal scratch']
  %s0 = inlined_call_operand.hbm [shape: f32[2,27], index: 0, kind: input, shape index: {}]
  %s1 = inlined_call_operand.hbm [shape: bf16[27,512], index: 1, kind: input, shape index: {}]
  %s2 = inlined_call_operand.vmem [shape: f32[1,512], index: 2, kind: input, shape index: {}]
  %s3 = inlined_call_operand.hbm [shape: bf16[2,512], index: 3, kind: output, shape index: {}]
  %s4 = sld [smem:[#allocation0]]
  $region30: #{tpu_custom_call.1} parent=0
    _
  %s6 = ssub.s32 1, %s4
  %s7 = scalar_select 0, %s6, %s4
  $region1: #{tpu_custom_call.1} parent=0
    #allocation2 [shape = 'u8[4096]{0}', space=vmem, size = 0x1000, scoped, tag = 'input window, operand 0, single buffered']
    #allocation3 [shape = 's32[1]{0}', space=sflag, size = 0x4, scoped, tag = 'scoped memory for tpu_custom_call.1']
    #allocation4 [shape = 's32[1]{0}', space=sflag, size = 0x4, scoped, tag = 'scoped memory for tpu_custom_call.1']
    #allocation5 [shape = 'u8[32768]{0}', space=vmem, size = 0x8000, scoped, tag = 'input window, operand 1, single buffered']
    #allocation6 [shape = 's32[1]{0}', space=sflag, size = 0x4, scoped, tag = 'scoped memory for tpu_custom_call.1']
    #allocation7 [shape = 'u8[8192]{0}', space=vmem, size = 0x2000, scoped, tag = 'output window, operand 0, single buffered']
    %8 = vsyncpa [#allocation3], 0
    %9 = vsyncpa [#allocation6], 0
    %10 = vsyncpa [#allocation4], 0
    // Predicated region
    $region2: #{tpu_custom_call.1} parent=1 // pred_check
      _
    $region3: #{tpu_custom_call.1} parent=1 // pred_check_branch
      %12 = sbr.rel (0) target = $region5
    $region4: #{tpu_custom_call.1} parent=1 // pred_region
      %s14 = ssub.s32 128, 32
      %15 = vsyncadd [#allocation3], %s14
      %s16 = sshll.u32 [#allocation2], 4
      %s17 = int_to_ptr.vmem [resolvable:$true] %s16
      %22 = dma.hbm_to_vmem [thread:$0]  %s0, 32, %s17, [#allocation3], 32, 32, 2
    $region5: #{tpu_custom_call.1} parent=1 // pred_fallthru
      _
    // Predicated region
    $region6: #{tpu_custom_call.1} parent=1 // pred_check
      _
    $region7: #{tpu_custom_call.1} parent=1 // pred_check_branch
      %24 = sbr.rel (0) target = $region9
    $region8: #{tpu_custom_call.1} parent=1 // pred_region
      %s26 = ssub.s32 1024, 1024
      %27 = vsyncadd [#allocation6], %s26
      %s28 = sshll.u32 [#allocation5], 4
      %s29 = int_to_ptr.vmem [resolvable:$true] %s28
      %34 = dma.hbm_to_vmem [thread:$0]  %s1, 1024, %s29, [#allocation6], 256, 256, 16
    $region9: #{tpu_custom_call.1} parent=1 // pred_fallthru
      _
    // Predicated region
    $region10: #{tpu_custom_call.1} parent=1 // pred_check
      _
    $region11: #{tpu_custom_call.1} parent=1 // pred_check_branch
      %36 = sbr.rel (0) target = $region13
    $region12: #{tpu_custom_call.1} parent=1 // pred_region
      _
    $region13: #{tpu_custom_call.1} parent=1 // pred_fallthru
      _
    // Predicated region
    $region14: #{tpu_custom_call.1} parent=1 // pred_check
      _
    $region15: #{tpu_custom_call.1} parent=1 // pred_check_branch
      %38 = sbr.rel (0) target = $region17
    $region16: #{tpu_custom_call.1} parent=1 // pred_region
      %39 = dma.done [#allocation3], 128
    $region17: #{tpu_custom_call.1} parent=1 // pred_fallthru
      _
    // Predicated region
    $region18: #{tpu_custom_call.1} parent=1 // pred_check
      _
    $region19: #{tpu_custom_call.1} parent=1 // pred_check_branch
      %41 = sbr.rel (0) target = $region21
    $region20: #{tpu_custom_call.1} parent=1 // pred_region
      %42 = dma.done [#allocation6], 1024
    $region21: #{tpu_custom_call.1} parent=1 // pred_fallthru
      _
    %v44 = vld [vmem:[#allocation2] sm:$0xff]
    %v45 = vpack.c.bf16 %v44, %v44
    %v46 = vld [vmem:[#allocation5] sm:$0xff]
    %v47 = vld [vmem:[#allocation5 + $0x8] sm:$0xff]
    %v48 = vld [vmem:[#allocation5 + $0x10] sm:$0xff]
    %v49 = vld [vmem:[#allocation5 + $0x18] sm:$0xff]
    %v50 = vld [vmem:[#allocation5 + $0x20] sm:$0xff]
    %v51 = vld [vmem:[#allocation5 + $0x28] sm:$0xff]
    %v52 = vld [vmem:[#allocation5 + $0x30] sm:$0x33]
    %v53 = vld [vmem:[#allocation5 + $0x38] sm:$0x33]
    %v54 = vld [vmem:[%s2] sm:$0xf]
    %v56 = vlaneseq
    %v57 = vshrl.u32 %v56, 7
    %v58 = vsub.s32 0, %v57
    %v59 = vrot.slane %v54, %v58
    %v60 = vlaneseq
    %v61 = vshrl.u32 %v60, 7
    %v62 = vsub.s32 1, %v61
    %v63 = vrot.slane %v54, %v62
    %v64 = vlaneseq
    %v65 = vshrl.u32 %v64, 7
    %v66 = vsub.s32 2, %v65
    %v67 = vrot.slane %v54, %v66
    %v68 = vlaneseq
    %v69 = vshrl.u32 %v68, 7
    %v70 = vsub.s32 3, %v69
    %v71 = vrot.slane %v54, %v70
    %v84 = vunpack.c.l.b16 %v46
    %v85 = vunpack.c.h.b16 %v46
    %v86 = vunpack.c.l.b16 %v47
    %v87 = vunpack.c.h.b16 %v47
    %v88 = vunpack.c.l.b16 %v48
    %v89 = vunpack.c.h.b16 %v48
    %v90 = vunpack.c.l.b16 %v49
    %v91 = vunpack.c.h.b16 %v49
    %v92 = vunpack.c.l.b16 %v50
    %v93 = vunpack.c.h.b16 %v50
    %v94 = vunpack.c.l.b16 %v51
    %v95 = vunpack.c.h.b16 %v51
    %v96 = vunpack.c.l.b16 %v52
    %v97 = vunpack.c.h.b16 %v52
    %v98 = vunpack.c.l.b16 %v53
    %v99 = vunpack.c.h.b16 %v53
    %v100 = vpack.c.b16 %v88, %v84
    %v101 = vpack.c.b16 %v89, %v85
    %v102 = vpack.c.b16 %v90, %v86
    %v103 = vpack.c.b16 %v91, %v87
    %v104 = vpack.c.b16 %v96, %v92
    %v105 = vpack.c.b16 %v97, %v93
    %v106 = vpack.c.b16 %v98, %v94
    %v107 = vpack.c.b16 %v99, %v95
    %vm112 = vcmask 220160
    %v114 = vsel %vm112, %v45, 0
    %vm116 = vcmask 1044480
    %vm117 = vcmask 1045504
    %v118 = vsel %vm116, 4294967295, 65535
    %v119 = vsel %vm117, %v118, 0
    %v121 = vand.u32 %v104, %v119
    %v124 = vand.u32 %v105, %v119
    %v127 = vand.u32 %v106, %v119
    %v130 = vand.u32 %v107, %v119
    %132 = vmatprep.subr.bf16.mxu0 %v101
    %133 = vmatpush1.bf16.msra.mxu0 %v100
    %134 = vmatprep.subr.bf16.mxu0 %v124
    %135 = vmatpush1.bf16.msra.mxu0 %v121
    %136 = vmatprep.subr.bf16.mxu0 0
    %137 = vmatpush1.bf16.msra.mxu0 0
    %138 = vmatprep.subr.bf16.mxu0 0
    %139 = vmatpush1.bf16.msra.mxu0 0
    %140 = vmatprep.subr.bf16.mxu0 0
    %141 = vmatpush1.bf16.msra.mxu0 0
    %142 = vmatprep.subr.bf16.mxu0 0
    %143 = vmatpush1.bf16.msra.mxu0 0
    %144 = vmatprep.subr.bf16.mxu0 0
    %145 = vmatpush1.bf16.msra.mxu0 0
    %146 = vmatprep.subr.bf16.mxu0 0
    %147 = vmatpush1.bf16.msra.mxu0 0
    %148 = vmatprep.subr.bf16.mxu0 0
    %149 = vmatpush1.bf16.msra.mxu0 0
    %150 = vmatprep.subr.bf16.mxu0 0
    %151 = vmatpush1.bf16.msra.mxu0 0
    %152 = vmatprep.subr.bf16.mxu0 0
    %153 = vmatpush1.bf16.msra.mxu0 0
    %154 = vmatprep.subr.bf16.mxu0 0
    %155 = vmatpush1.bf16.msra.mxu0 0
    %156 = vmatprep.subr.bf16.mxu0 0
    %157 = vmatpush1.bf16.msra.mxu0 0
    %158 = vmatprep.subr.bf16.mxu0 0
    %159 = vmatpush1.bf16.msra.mxu0 0
    %160 = vmatprep.subr.bf16.mxu0 0
    %161 = vmatpush1.bf16.msra.mxu0 0
    %162 = vmatprep.subr.bf16.mxu0 0
    %163 = vmatpush1.bf16.msra.mxu0 0
    %164 = vmatprep.mubr.bf16.mxu0 0
    %165 = vmatmul.mubr.bf16.gmra.mrb[0].mxu0 %v114
    %v166 = vpop.f32.mrb[0].mxu0
    %v167 = vadd.f32 %v59, %v166
    %v168 = vpop.f32.mrb[0].mxu0
    %v169 = vadd.f32 %v63, %v168
    %v170 = vpop.f32.mrb[0].mxu0
    %v171 = vpop.f32.mrb[0].mxu0
    %172 = vdwg.mxu0
    %173 = vmatprep.subr.bf16.mxu0 %v103
    %174 = vmatpush1.bf16.msra.mxu0 %v102
    %175 = vmatprep.subr.bf16.mxu0 %v130
    %176 = vmatpush1.bf16.msra.mxu0 %v127
    %177 = vmatprep.subr.bf16.mxu0 0
    %178 = vmatpush1.bf16.msra.mxu0 0
    %179 = vmatprep.subr.bf16.mxu0 0
    %180 = vmatpush1.bf16.msra.mxu0 0
    %181 = vmatprep.subr.bf16.mxu0 0
    %182 = vmatpush1.bf16.msra.mxu0 0
    %183 = vmatprep.subr.bf16.mxu0 0
    %184 = vmatpush1.bf16.msra.mxu0 0
    %185 = vmatprep.subr.bf16.mxu0 0
    %186 = vmatpush1.bf16.msra.mxu0 0
    %187 = vmatprep.subr.bf16.mxu0 0
    %188 = vmatpush1.bf16.msra.mxu0 0
    %189 = vmatprep.subr.bf16.mxu0 0
    %190 = vmatpush1.bf16.msra.mxu0 0
    %191 = vmatprep.subr.bf16.mxu0 0
    %192 = vmatpush1.bf16.msra.mxu0 0
    %193 = vmatprep.subr.bf16.mxu0 0
    %194 = vmatpush1.bf16.msra.mxu0 0
    %195 = vmatprep.subr.bf16.mxu0 0
    %196 = vmatpush1.bf16.msra.mxu0 0
    %197 = vmatprep.subr.bf16.mxu0 0
    %198 = vmatpush1.bf16.msra.mxu0 0
    %199 = vmatprep.subr.bf16.mxu0 0
    %200 = vmatpush1.bf16.msra.mxu0 0
    %201 = vmatprep.subr.bf16.mxu0 0
    %202 = vmatpush1.bf16.msra.mxu0 0
    %203 = vmatprep.subr.bf16.mxu0 0
    %204 = vmatpush1.bf16.msra.mxu0 0
    %205 = vmatprep.mubr.bf16.mxu0 0
    %206 = vmatmul.mubr.bf16.gmra.mrb[0].mxu0 %v114
    %v207 = vpop.f32.mrb[0].mxu0
    %v208 = vadd.f32 %v67, %v207
    %v209 = vpop.f32.mrb[0].mxu0
    %v210 = vadd.f32 %v71, %v209
    %v211 = vpop.f32.mrb[0].mxu0
    %v212 = vpop.f32.mrb[0].mxu0
    %213 = vdwg.mxu0
    %v214 = vpack.c.bf16 %v167, %v167
    %v215 = vpack.c.bf16 %v169, %v169
    %v216 = vpack.c.bf16 %v208, %v208
    %v217 = vpack.c.bf16 %v210, %v210
    %v222 = vcombine.low %v214, %v215
    %v223 = vcombine.low %v216, %v217
    %v225 = vunpack.c.l.s4 1966171168
    %v226 = vunpack.c.0.s8 %v225
    %v227 = vlaneseq
    %v228 = vshrl.u32 %v227, 7
    %v229 = vsub.s32 %v226, %v228
    %v230 = vrot.slane %v222, %v229
    %v232 = vunpack.c.l.s4 1966171168
    %v233 = vunpack.c.0.s8 %v232
    %v234 = vlaneseq
    %v235 = vshrl.u32 %v234, 7
    %v236 = vsub.s32 %v233, %v235
    %v237 = vrot.slane %v223, %v236
    %v238 = vcombine.low %v230, %v237
    %v239 = vcombine.high %v230, %v237
    %v241 = vunpack.c.l.s4 1966171168
    %v242 = vunpack.c.0.s8 %v241
    %v243 = vlaneseq
    %v244 = vshrl.u32 %v243, 7
    %v245 = vsub.s32 %v242, %v244
    %v246 = vrot.slane %v238, %v245
    %v248 = vunpack.c.l.s4 1966171168
    %v249 = vunpack.c.0.s8 %v248
    %v250 = vlaneseq
    %v251 = vshrl.u32 %v250, 7
    %v252 = vsub.s32 %v249, %v251
    %v253 = vrot.slane %v239, %v252
    %v254 = vcombine.high %v246, %v246
    %v255 = vcombine.high %v253, %v253
    %260 = vst [vmem:[#allocation7] sm:$0xf] %v246
    %261 = vst [vmem:[#allocation7 + $0x4] sm:$0xf] %v253
    %262 = vst [vmem:[#allocation7 + $0x8] sm:$0xf] %v254
    %263 = vst [vmem:[#allocation7 + $0xc] sm:$0xf] %v255
    // Predicated region
    $region22: #{tpu_custom_call.1} parent=1 // pred_check
      _
    $region23: #{tpu_custom_call.1} parent=1 // pred_check_branch
      %265 = sbr.rel (0) target = $region25
    $region24: #{tpu_custom_call.1} parent=1 // pred_region
      %s267 = ssub.s32 256, 64
      %268 = vsyncadd [#allocation4], %s267
      %s269 = sshll.u32 [#allocation7], 4
      %s270 = int_to_ptr.vmem [resolvable:$true] %s269
      %275 = dma.vmem_to_hbm [thread:$0]  %s270, 64, %s3, [#allocation4], 64, 64, 4
    $region25: #{tpu_custom_call.1} parent=1 // pred_fallthru
      _
    // Predicated region
    $region26: #{tpu_custom_call.1} parent=1 // pred_check
      _
    $region27: #{tpu_custom_call.1} parent=1 // pred_check_branch
      %277 = sbr.rel (0) target = $region29
    $region28: #{tpu_custom_call.1} parent=1 // pred_region
      %278 = dma.done [#allocation4], 256
    $region29: #{tpu_custom_call.1} parent=1 // pred_fallthru
      _
    %279 = vsyncpa [#allocation3], 1
    %280 = vsyncpa [#allocation6], 1
    %281 = vsyncpa [#allocation4], 1

</llo_original>
